<compile_context>
chip_gen: v5e
topology: v5e:2x2
jax: 0.10.0
libtpu: 0.0.40
codegen_flags: <defaults>
</compile_context>

<pallas_src>
import functools

import jax
import jax.numpy as jnp
from jax.experimental import pallas as pl
from jax.experimental.pallas import tpu as pltpu

_LANE = 128
_MAX_TILE_M = 1024                    # default M-tile (512-2048 sweet spot)
_VMEM_LIMIT = 32 * 1024 * 1024        # explicit scoped-VMEM budget


def _round_up(x, m):
    return (x + m - 1) // m * m


# ----------------------------- Pallas kernels -------------------------------
# Layouts (per grid step, TM = tile along M):
#   activations:     (C, TM)      channels on sublanes, M on lanes
#   dw taps:         (9, C, TM)
#   dw weights:      (9, C, 1)    f32 (raw conv weights; BN folded downstream)
#   fused bias:      (Cout, 1)    f32
#   1x1 weights:     (Cout, Cin)  BN-scale + channel_shuffle already folded


def _dw_acc(taps_ref, wdw_ref):
    """Depthwise 3x3: per-channel MAC over the 9 taps (VPU, lane-dense)."""
    d = taps_ref[0].astype(jnp.float32) * wdw_ref[0]
    for t in range(1, taps_ref.shape[0]):
        d = d + taps_ref[t].astype(jnp.float32) * wdw_ref[t]
    return d


def _pw_bias_relu_kernel(x_ref, w_ref, b_ref, o_ref):
    """1x1 conv (MXU) + fused bias + ReLU.  out = relu(W @ x + b)."""
    acc = jnp.dot(w_ref[...], x_ref[...], preferred_element_type=jnp.float32)
    o_ref[...] = jnp.maximum(acc + b_ref[...], 0.0).astype(o_ref.dtype)


def _s1_fused_kernel(x1_ref, taps_ref, wdw_ref, wpw_ref, wid_ref, b_ref, o_ref):
    """stride-1 block, fully fused:
       branch2: dw3x3 -> folded 1x1 + bias + ReLU  (odd output channels)
       branch1: identity x1                        (even output channels)
       BN + channel_shuffle pre-folded into wpw / wid / b."""
    d = _dw_acc(taps_ref, wdw_ref)
    acc = jnp.dot(wpw_ref[...], d.astype(wpw_ref.dtype),
                  preferred_element_type=jnp.float32)        # -> odd channels
    y = jnp.maximum(acc + b_ref[...], 0.0)                   # even rows stay 0
    y = y + jnp.dot(wid_ref[...], x1_ref[...],
                    preferred_element_type=jnp.float32)      # identity -> even
    o_ref[...] = y.astype(o_ref.dtype)


def _s2_fused_kernel(t1_ref, t2_ref, wdw1_ref, wdw2_ref,
                     wpw1_ref, wpw2_ref, b_ref, o_ref):
    """stride-2 block, second stage, fully fused:
       branch1: dw3x3(s2) -> folded 1x1 + bias + ReLU  (even output channels)
       branch2: dw3x3(s2) -> folded 1x1 + bias + ReLU  (odd  output channels)
       BN + channel_shuffle folded into the expanded pointwise weights."""
    d1 = _dw_acc(t1_ref, wdw1_ref)
    d2 = _dw_acc(t2_ref, wdw2_ref)
    acc = jnp.dot(wpw1_ref[...], d1.astype(wpw1_ref.dtype),
                  preferred_element_type=jnp.float32)
    acc = acc + jnp.dot(wpw2_ref[...], d2.astype(wpw2_ref.dtype),
                        preferred_element_type=jnp.float32)
    o_ref[...] = jnp.maximum(acc + b_ref[...], 0.0).astype(o_ref.dtype)


# ---------------------------- pallas_call driver -----------------------------

def _m_spec(shape_prefix, tm):
    """BlockSpec for an array whose trailing axis is M, tiled by `tm`."""
    nd = len(shape_prefix) + 1

    def idx(i):
        return (0,) * (nd - 1) + (i,)

    return pl.BlockSpec(tuple(shape_prefix) + (tm,), idx)


def _const_spec(shape):
    """Full-array block, same block index every grid step (stays in VMEM)."""
    nd = len(shape)
    return pl.BlockSpec(tuple(shape), lambda i: (0,) * nd)


def _call(kernel, m_args, const_args, out_channels, tile_m,
          out_dtype=jnp.float32):
    m = m_args[0].shape[-1]
    tm = tile_m if tile_m is not None else _MAX_TILE_M
    tm = min(_round_up(tm, _LANE), _round_up(m, _LANE))
    mp = _round_up(m, tm)
    padded = [jnp.pad(a, [(0, 0)] * (a.ndim - 1) + [(0, mp - m)])
              if mp != m else a for a in m_args]
    in_specs = ([_m_spec(a.shape[:-1], tm) for a in padded]
                + [_const_spec(a.shape) for a in const_args])
    out = pl.pallas_call(
        kernel,
        grid=(mp // tm,),
        in_specs=in_specs,
        out_specs=_m_spec((out_channels,), tm),
        out_shape=jax.ShapeDtypeStruct((out_channels, mp), out_dtype),
        compiler_params=pltpu.CompilerParams(
            dimension_semantics=("parallel",),      # megacore sharding
            vmem_limit_bytes=_VMEM_LIMIT),
    )(*padded, *const_args)
    return out[:, :m]


# ------------------------------- JAX plumbing --------------------------------

def _dw_taps(x_cnhw, stride):
    """3x3, pad=1 depthwise-conv patch extraction in channel-major layout.
    x: (C, N, H, W)  ->  (9, C, N*Ho*Wo), Ho, Wo."""
    c, n, h, w = x_cnhw.shape
    ho = (h - 1) // stride + 1
    wo = (w - 1) // stride + 1
    xp = jnp.pad(x_cnhw, ((0, 0), (0, 0), (1, 1), (1, 1)))
    taps = []
    for ky in range(3):
        for kx in range(3):
            sl = xp[:, :, ky:ky + stride * (ho - 1) + 1:stride,
                          kx:kx + stride * (wo - 1) + 1:stride]
            taps.append(sl.reshape(c, n * ho * wo))
    return jnp.stack(taps, axis=0), ho, wo


@functools.partial(jax.jit, static_argnames=("stride", "compute_dtype", "tile_m"))
def shufflenet_v2_block(x_nchw, params, stride, compute_dtype=jnp.float32,
                        tile_m=None):
    """Forward pass of ShuffleNetV2Block.  x: (N, C, H, W) f32 -> (N, C, Ho, Wo)."""
    n, c, h, w = x_nchw.shape
    assert c % 2 == 0
    bfc = c // 2
    eps = 1e-5
    cd = compute_dtype

    x = jnp.transpose(x_nchw, (1, 0, 2, 3)).astype(jnp.float32)   # (C, N, H, W)

    def fold_bn(bn):
        scale = bn["gamma"] / jnp.sqrt(bn["var"] + eps)
        shift = bn["beta"] - bn["mean"] * scale
        return scale, shift

    def col(v):                       # (C,) -> (C, 1) f32 (broadcast over lanes)
        return v.reshape(-1, 1).astype(jnp.float32)

    def dw_w(wt):                     # (C, 3, 3) -> (9, C, 1) f32
        return jnp.transpose(wt.reshape(-1, 9), (1, 0))[:, :, None].astype(jnp.float32)

    if stride == 1:
        x1 = x[:bfc].reshape(bfc, n * h * w)
        taps, ho, wo = _dw_taps(x[bfc:], 1)

        s_dw, b_dw = fold_bn(params["b2_bn1"])
        s_pw, b_pw = fold_bn(params["b2_bn2"])

        # Fold dw-BN and pw-BN through the 1x1:
        #   relu(s_pw*(W@(s_dw*d + b_dw)) + b_pw) == relu(W'@d + b')
        w_pw = params["b2_pw_w"]
        w_fold = (s_pw[:, None] * w_pw) * s_dw[None, :]
        b_fold = s_pw * (w_pw @ b_dw) + b_pw

        # channel_shuffle(groups=2) folded: branch1(identity x1) -> even rows,
        # branch2 -> odd rows of the output.
        wpw = jnp.zeros((c, bfc), jnp.float32).at[1::2, :].set(w_fold)
        wid = jnp.zeros((c, bfc), jnp.float32).at[0::2, :].set(jnp.eye(bfc))
        bfs = jnp.zeros((c,), jnp.float32).at[1::2].set(b_fold)

        out_cm = _call(
            _s1_fused_kernel,
            m_args=[x1.astype(cd), taps.astype(cd)],
            const_args=[dw_w(params["b2_dw_w"]),
                        wpw.astype(cd), wid.astype(cd), col(bfs)],
            out_channels=c, tile_m=tile_m)
        out = out_cm.reshape(c, n, h, w)
    else:
        m0 = n * h * w
        # Stage 1: branch2 first 1x1 + BN + ReLU at full resolution
        # (BN scale folded into the weights, shift kept as bias).
        s1_, b1_ = fold_bn(params["b2_bn1"])
        w1 = s1_[:, None] * params["b2_pw1_w"]
        z = _call(
            _pw_bias_relu_kernel,
            m_args=[x.reshape(c, m0).astype(cd)],
            const_args=[w1.astype(cd), col(b1_)],
            out_channels=bfc, tile_m=tile_m, out_dtype=cd)
        z = z.reshape(bfc, n, h, w)

        t1, ho, wo = _dw_taps(x, 2)          # branch1 dw taps of x
        t2, _, _ = _dw_taps(z, 2)            # branch2 dw taps of z

        s_dw1, b_dw1 = fold_bn(params["b1_bn1"])
        s_pw1, b_pw1 = fold_bn(params["b1_bn2"])
        s_dw2, b_dw2 = fold_bn(params["b2_bn2"])
        s_pw2, b_pw2 = fold_bn(params["b2_bn3"])

        w_b1 = (s_pw1[:, None] * params["b1_pw_w"]) * s_dw1[None, :]
        b_b1 = s_pw1 * (params["b1_pw_w"] @ b_dw1) + b_pw1
        w_b2 = (s_pw2[:, None] * params["b2_pw2_w"]) * s_dw2[None, :]
        b_b2 = s_pw2 * (params["b2_pw2_w"] @ b_dw2) + b_pw2

        # channel_shuffle folded: branch1 -> even rows, branch2 -> odd rows.
        wpw1 = jnp.zeros((c, c), jnp.float32).at[0::2, :].set(w_b1)
        wpw2 = jnp.zeros((c, bfc), jnp.float32).at[1::2, :].set(w_b2)
        bfs = jnp.zeros((c,), jnp.float32).at[0::2].set(b_b1).at[1::2].set(b_b2)

        out_cm = _call(
            _s2_fused_kernel,
            m_args=[t1.astype(cd), t2.astype(cd)],
            const_args=[dw_w(params["b1_dw_w"]), dw_w(params["b2_dw_w"]),
                        wpw1.astype(cd), wpw2.astype(cd), col(bfs)],
            out_channels=c, tile_m=tile_m)
        out = out_cm.reshape(c, n, ho, wo)

    return jnp.transpose(out, (1, 0, 2, 3))   # (C, N, Ho, Wo) -> NCHW


# --------------------------- deterministic params ----------------------------

def init_params(key, inplanes, stride):
    bfc = inplanes // 2
    keys = iter(jax.random.split(key, 32))

    def conv(cout, cin, k):
        fan = float(cin * k * k)
        return (jax.random.normal(next(keys), (cout, cin, k, k), jnp.float32)
                / jnp.sqrt(fan))

    def bn(cn):
        return dict(
            gamma=1.0 + 0.1 * jax.random.normal(next(keys), (cn,), jnp.float32),
            beta=0.1 * jax.random.normal(next(keys), (cn,), jnp.float32),
            mean=0.05 * jax.random.normal(next(keys), (cn,), jnp.float32),
            var=1.0 + 0.1 * jax.random.uniform(next(keys), (cn,), jnp.float32),
        )

    p = {}
    if stride == 2:
        p["b1_dw_w"] = conv(inplanes, 1, 3).reshape(inplanes, 3, 3)
        p["b1_bn1"] = bn(inplanes)
        p["b1_pw_w"] = conv(bfc, inplanes, 1).reshape(bfc, inplanes)
        p["b1_bn2"] = bn(bfc)
        p["b2_pw1_w"] = conv(bfc, inplanes, 1).reshape(bfc, inplanes)
        p["b2_bn1"] = bn(bfc)
        p["b2_dw_w"] = conv(bfc, 1, 3).reshape(bfc, 3, 3)
        p["b2_bn2"] = bn(bfc)
        p["b2_pw2_w"] = conv(bfc, bfc, 1).reshape(bfc, bfc)
        p["b2_bn3"] = bn(bfc)
    else:
        p["b2_dw_w"] = conv(bfc, 1, 3).reshape(bfc, 3, 3)
        p["b2_bn1"] = bn(bfc)
        p["b2_pw_w"] = conv(bfc, bfc, 1).reshape(bfc, bfc)
        p["b2_bn2"] = bn(bfc)
    return p


# ------------------------------ pure-JAX reference ---------------------------

def ref_forward(x_nchw, params, stride, eps=1e-5):
    dn = ("NCHW", "OIHW", "NCHW")

    def conv(xx, wt, s, pad, groups=1):
        return jax.lax.conv_general_dilated(
            xx, wt, (s, s), [(pad, pad), (pad, pad)],
            dimension_numbers=dn, feature_group_count=groups)

    def bnorm(xx, bn):
        sc = bn["gamma"] / jnp.sqrt(bn["var"] + eps)
        sh = bn["beta"] - bn["mean"] * sc
        return xx * sc.reshape(1, -1, 1, 1) + sh.reshape(1, -1, 1, 1)

    relu = lambda t: jnp.maximum(t, 0.0)
    c = x_nchw.shape[1]
    bfc = c // 2
    x = x_nchw.astype(jnp.float32)

    if stride == 1:
        x1, x2 = x[:, :bfc], x[:, bfc:]
        b2 = bnorm(conv(x2, params["b2_dw_w"].reshape(bfc, 1, 3, 3), 1, 1, bfc),
                   params["b2_bn1"])
        b2 = relu(bnorm(conv(b2, params["b2_pw_w"].reshape(bfc, bfc, 1, 1), 1, 0),
                        params["b2_bn2"]))
        out = jnp.concatenate([x1, b2], axis=1)
    else:
        b1 = bnorm(conv(x, params["b1_dw_w"].reshape(c, 1, 3, 3), 2, 1, c),
                   params["b1_bn1"])
        b1 = relu(bnorm(conv(b1, params["b1_pw_w"].reshape(bfc, c, 1, 1), 1, 0),
                        params["b1_bn2"]))
        b2 = relu(bnorm(conv(x, params["b2_pw1_w"].reshape(bfc, c, 1, 1), 1, 0),
                        params["b2_bn1"]))
        b2 = bnorm(conv(b2, params["b2_dw_w"].reshape(bfc, 1, 3, 3), 2, 1, bfc),
                   params["b2_bn2"])
        b2 = relu(bnorm(conv(b2, params["b2_pw2_w"].reshape(bfc, bfc, 1, 1), 1, 0),
                        params["b2_bn3"]))
        out = jnp.concatenate([b1, b2], axis=1)

    # channel_shuffle(out, groups=2)
    nn_, cc, hh, ww = out.shape
    out = (out.reshape(nn_, 2, cc // 2, hh, ww)
              .transpose(0, 2, 1, 3, 4)
              .reshape(nn_, cc, hh, ww))
    return out


# ----------------------------------- main ------------------------------------

if __name__ == "__main__":
    key = jax.random.PRNGKey(0)
    kx, kp1, kp2 = jax.random.split(key, 3)

    n, c, h, w = 2, 16, 16, 16
    x = jax.random.normal(kx, (n, c, h, w), jnp.float32)

    for stride, kp in ((1, kp1), (2, kp2)):
        params = init_params(kp, c, stride)
        ref = jax.block_until_ready(ref_forward(x, params, stride))

        # f32 path (tile_m=128 so the test exercises multi-step pipelined grids)
        out = jax.block_until_ready(
            shufflenet_v2_block(x, params, stride=stride, tile_m=128))
        assert out.shape == ref.shape, (stride, out.shape, ref.shape)
        err = float(jnp.max(jnp.abs(out - ref)))
        assert err < 5e-4, ("f32 mismatch", stride, err)

        # bf16 MXU/DMA fast path (v6e/v7x bandwidth win) -- looser tolerance.
        out_bf16 = jax.block_until_ready(
            shufflenet_v2_block(x, params, stride=stride,
                                compute_dtype=jnp.bfloat16, tile_m=128))
        err_bf = float(jnp.max(jnp.abs(out_bf16.astype(jnp.float32) - ref)))
        assert err_bf < 1e-1, ("bf16 mismatch", stride, err_bf)

    print("KERNEL_OK")
</pallas_src>

<mosaic_0001>
module attributes {stable_mosaic.version = 11 : i64} {
  func.func @_s1_fused_kernel(%arg0: i32, %arg1: memref<8x128xf32, #tpu.memory_space<vmem>>, %arg2: memref<9x8x128xf32, #tpu.memory_space<vmem>>, %arg3: memref<9x8x1xf32, #tpu.memory_space<vmem>>, %arg4: memref<16x8xf32, #tpu.memory_space<vmem>>, %arg5: memref<16x8xf32, #tpu.memory_space<vmem>>, %arg6: memref<16x1xf32, #tpu.memory_space<vmem>>, %arg7: memref<16x128xf32, #tpu.memory_space<vmem>>) attributes {dimension_semantics = [#tpu.dimension_semantics<parallel>], iteration_bounds = array<i64: 4>, scalar_prefetch = 0 : i64, scratch_operands = 0 : i64, tpu.core_type = #tpu.core_type<tc>, window_params = [{transform_indices = @transform_0, window_bounds = array<i64: 8, 128>}, {transform_indices = @transform_1, window_bounds = array<i64: 9, 8, 128>}, {pipeline_mode = #tpu.pipeline_mode<synchronous>, transform_indices = @transform_2, window_bounds = array<i64: 9, 8, 1>}, {pipeline_mode = #tpu.pipeline_mode<synchronous>, transform_indices = @transform_3, window_bounds = array<i64: 16, 8>}, {pipeline_mode = #tpu.pipeline_mode<synchronous>, transform_indices = @transform_4, window_bounds = array<i64: 16, 8>}, {pipeline_mode = #tpu.pipeline_mode<synchronous>, transform_indices = @transform_5, window_bounds = array<i64: 16, 1>}, {transform_indices = @transform_6, window_bounds = array<i64: 16, 128>}]} {
    %c0 = arith.constant 0 : index
    %c0_0 = arith.constant 0 : index
    %c0_1 = arith.constant 0 : index
    %0 = vector.load %arg2[%c0, %c0_0, %c0_1] : memref<9x8x128xf32, #tpu.memory_space<vmem>>, vector<1x8x128xf32>
    %1 = vector.shape_cast %0 : vector<1x8x128xf32> to vector<8x128xf32>
    %c0_2 = arith.constant 0 : index
    %c0_3 = arith.constant 0 : index
    %c0_4 = arith.constant 0 : index
    %2 = vector.load %arg3[%c0_2, %c0_3, %c0_4] : memref<9x8x1xf32, #tpu.memory_space<vmem>>, vector<1x8x1xf32>
    %3 = vector.shape_cast %2 : vector<1x8x1xf32> to vector<8x1xf32>
    %4 = vector.broadcast %3 : vector<8x1xf32> to vector<8x128xf32>
    %5 = arith.mulf %1, %4 : vector<8x128xf32>
    %c1 = arith.constant 1 : index
    %c0_5 = arith.constant 0 : index
    %c0_6 = arith.constant 0 : index
    %6 = vector.load %arg2[%c1, %c0_5, %c0_6] : memref<9x8x128xf32, #tpu.memory_space<vmem>>, vector<1x8x128xf32>
    %7 = vector.shape_cast %6 : vector<1x8x128xf32> to vector<8x128xf32>
    %c1_7 = arith.constant 1 : index
    %c0_8 = arith.constant 0 : index
    %c0_9 = arith.constant 0 : index
    %8 = vector.load %arg3[%c1_7, %c0_8, %c0_9] : memref<9x8x1xf32, #tpu.memory_space<vmem>>, vector<1x8x1xf32>
    %9 = vector.shape_cast %8 : vector<1x8x1xf32> to vector<8x1xf32>
    %10 = vector.broadcast %9 : vector<8x1xf32> to vector<8x128xf32>
    %11 = arith.mulf %7, %10 : vector<8x128xf32>
    %12 = arith.addf %5, %11 : vector<8x128xf32>
    %c2 = arith.constant 2 : index
    %c0_10 = arith.constant 0 : index
    %c0_11 = arith.constant 0 : index
    %13 = vector.load %arg2[%c2, %c0_10, %c0_11] : memref<9x8x128xf32, #tpu.memory_space<vmem>>, vector<1x8x128xf32>
    %14 = vector.shape_cast %13 : vector<1x8x128xf32> to vector<8x128xf32>
    %c2_12 = arith.constant 2 : index
    %c0_13 = arith.constant 0 : index
    %c0_14 = arith.constant 0 : index
    %15 = vector.load %arg3[%c2_12, %c0_13, %c0_14] : memref<9x8x1xf32, #tpu.memory_space<vmem>>, vector<1x8x1xf32>
    %16 = vector.shape_cast %15 : vector<1x8x1xf32> to vector<8x1xf32>
    %17 = vector.broadcast %16 : vector<8x1xf32> to vector<8x128xf32>
    %18 = arith.mulf %14, %17 : vector<8x128xf32>
    %19 = arith.addf %12, %18 : vector<8x128xf32>
    %c3 = arith.constant 3 : index
    %c0_15 = arith.constant 0 : index
    %c0_16 = arith.constant 0 : index
    %20 = vector.load %arg2[%c3, %c0_15, %c0_16] : memref<9x8x128xf32, #tpu.memory_space<vmem>>, vector<1x8x128xf32>
    %21 = vector.shape_cast %20 : vector<1x8x128xf32> to vector<8x128xf32>
    %c3_17 = arith.constant 3 : index
    %c0_18 = arith.constant 0 : index
    %c0_19 = arith.constant 0 : index
    %22 = vector.load %arg3[%c3_17, %c0_18, %c0_19] : memref<9x8x1xf32, #tpu.memory_space<vmem>>, vector<1x8x1xf32>
    %23 = vector.shape_cast %22 : vector<1x8x1xf32> to vector<8x1xf32>
    %24 = vector.broadcast %23 : vector<8x1xf32> to vector<8x128xf32>
    %25 = arith.mulf %21, %24 : vector<8x128xf32>
    %26 = arith.addf %19, %25 : vector<8x128xf32>
    %c4 = arith.constant 4 : index
    %c0_20 = arith.constant 0 : index
    %c0_21 = arith.constant 0 : index
    %27 = vector.load %arg2[%c4, %c0_20, %c0_21] : memref<9x8x128xf32, #tpu.memory_space<vmem>>, vector<1x8x128xf32>
    %28 = vector.shape_cast %27 : vector<1x8x128xf32> to vector<8x128xf32>
    %c4_22 = arith.constant 4 : index
    %c0_23 = arith.constant 0 : index
    %c0_24 = arith.constant 0 : index
    %29 = vector.load %arg3[%c4_22, %c0_23, %c0_24] : memref<9x8x1xf32, #tpu.memory_space<vmem>>, vector<1x8x1xf32>
    %30 = vector.shape_cast %29 : vector<1x8x1xf32> to vector<8x1xf32>
    %31 = vector.broadcast %30 : vector<8x1xf32> to vector<8x128xf32>
    %32 = arith.mulf %28, %31 : vector<8x128xf32>
    %33 = arith.addf %26, %32 : vector<8x128xf32>
    %c5 = arith.constant 5 : index
    %c0_25 = arith.constant 0 : index
    %c0_26 = arith.constant 0 : index
    %34 = vector.load %arg2[%c5, %c0_25, %c0_26] : memref<9x8x128xf32, #tpu.memory_space<vmem>>, vector<1x8x128xf32>
    %35 = vector.shape_cast %34 : vector<1x8x128xf32> to vector<8x128xf32>
    %c5_27 = arith.constant 5 : index
    %c0_28 = arith.constant 0 : index
    %c0_29 = arith.constant 0 : index
    %36 = vector.load %arg3[%c5_27, %c0_28, %c0_29] : memref<9x8x1xf32, #tpu.memory_space<vmem>>, vector<1x8x1xf32>
    %37 = vector.shape_cast %36 : vector<1x8x1xf32> to vector<8x1xf32>
    %38 = vector.broadcast %37 : vector<8x1xf32> to vector<8x128xf32>
    %39 = arith.mulf %35, %38 : vector<8x128xf32>
    %40 = arith.addf %33, %39 : vector<8x128xf32>
    %c6 = arith.constant 6 : index
    %c0_30 = arith.constant 0 : index
    %c0_31 = arith.constant 0 : index
    %41 = vector.load %arg2[%c6, %c0_30, %c0_31] : memref<9x8x128xf32, #tpu.memory_space<vmem>>, vector<1x8x128xf32>
    %42 = vector.shape_cast %41 : vector<1x8x128xf32> to vector<8x128xf32>
    %c6_32 = arith.constant 6 : index
    %c0_33 = arith.constant 0 : index
    %c0_34 = arith.constant 0 : index
    %43 = vector.load %arg3[%c6_32, %c0_33, %c0_34] : memref<9x8x1xf32, #tpu.memory_space<vmem>>, vector<1x8x1xf32>
    %44 = vector.shape_cast %43 : vector<1x8x1xf32> to vector<8x1xf32>
    %45 = vector.broadcast %44 : vector<8x1xf32> to vector<8x128xf32>
    %46 = arith.mulf %42, %45 : vector<8x128xf32>
    %47 = arith.addf %40, %46 : vector<8x128xf32>
    %c7 = arith.constant 7 : index
    %c0_35 = arith.constant 0 : index
    %c0_36 = arith.constant 0 : index
    %48 = vector.load %arg2[%c7, %c0_35, %c0_36] : memref<9x8x128xf32, #tpu.memory_space<vmem>>, vector<1x8x128xf32>
    %49 = vector.shape_cast %48 : vector<1x8x128xf32> to vector<8x128xf32>
    %c7_37 = arith.constant 7 : index
    %c0_38 = arith.constant 0 : index
    %c0_39 = arith.constant 0 : index
    %50 = vector.load %arg3[%c7_37, %c0_38, %c0_39] : memref<9x8x1xf32, #tpu.memory_space<vmem>>, vector<1x8x1xf32>
    %51 = vector.shape_cast %50 : vector<1x8x1xf32> to vector<8x1xf32>
    %52 = vector.broadcast %51 : vector<8x1xf32> to vector<8x128xf32>
    %53 = arith.mulf %49, %52 : vector<8x128xf32>
    %54 = arith.addf %47, %53 : vector<8x128xf32>
    %c8 = arith.constant 8 : index
    %c0_40 = arith.constant 0 : index
    %c0_41 = arith.constant 0 : index
    %55 = vector.load %arg2[%c8, %c0_40, %c0_41] : memref<9x8x128xf32, #tpu.memory_space<vmem>>, vector<1x8x128xf32>
    %56 = vector.shape_cast %55 : vector<1x8x128xf32> to vector<8x128xf32>
    %c8_42 = arith.constant 8 : index
    %c0_43 = arith.constant 0 : index
    %c0_44 = arith.constant 0 : index
    %57 = vector.load %arg3[%c8_42, %c0_43, %c0_44] : memref<9x8x1xf32, #tpu.memory_space<vmem>>, vector<1x8x1xf32>
    %58 = vector.shape_cast %57 : vector<1x8x1xf32> to vector<8x1xf32>
    %59 = vector.broadcast %58 : vector<8x1xf32> to vector<8x128xf32>
    %60 = arith.mulf %56, %59 : vector<8x128xf32>
    %61 = arith.addf %54, %60 : vector<8x128xf32>
    %c0_45 = arith.constant 0 : index
    %c0_46 = arith.constant 0 : index
    %62 = vector.load %arg4[%c0_45, %c0_46] : memref<16x8xf32, #tpu.memory_space<vmem>>, vector<16x8xf32>
    %cst = arith.constant dense<0.000000e+00> : vector<16x128xf32>
    %63 = tpu.matmul %62, %61, %cst {dimension_numbers = #tpu.dot_dimension_numbers<[1], [0], [0], [1], [0, 0, 1, 1], [], []>} : vector<16x8xf32>, vector<8x128xf32>, vector<16x128xf32> -> vector<16x128xf32>
    %c0_47 = arith.constant 0 : index
    %c0_48 = arith.constant 0 : index
    %64 = vector.load %arg6[%c0_47, %c0_48] : memref<16x1xf32, #tpu.memory_space<vmem>>, vector<16x1xf32>
    %65 = vector.broadcast %64 : vector<16x1xf32> to vector<16x128xf32>
    %66 = arith.addf %63, %65 : vector<16x128xf32>
    %cst_49 = arith.constant 0.000000e+00 : f32
    %67 = vector.broadcast %cst_49 : f32 to vector<16x128xf32>
    %68 = arith.maximumf %66, %67 : vector<16x128xf32>
    %c0_50 = arith.constant 0 : index
    %c0_51 = arith.constant 0 : index
    %69 = vector.load %arg5[%c0_50, %c0_51] : memref<16x8xf32, #tpu.memory_space<vmem>>, vector<16x8xf32>
    %c0_52 = arith.constant 0 : index
    %c0_53 = arith.constant 0 : index
    %70 = vector.load %arg1[%c0_52, %c0_53] : memref<8x128xf32, #tpu.memory_space<vmem>>, vector<8x128xf32>
    %cst_54 = arith.constant dense<0.000000e+00> : vector<16x128xf32>
    %71 = tpu.matmul %69, %70, %cst_54 {dimension_numbers = #tpu.dot_dimension_numbers<[1], [0], [0], [1], [0, 0, 1, 1], [], []>} : vector<16x8xf32>, vector<8x128xf32>, vector<16x128xf32> -> vector<16x128xf32>
    %72 = arith.addf %68, %71 : vector<16x128xf32>
    %c0_55 = arith.constant 0 : index
    %c0_56 = arith.constant 0 : index
    %73 = vector.load %arg7[%c0_55, %c0_56] : memref<16x128xf32, #tpu.memory_space<vmem>>, vector<16x128xf32>
    tpu.vector_store %arg7[%c0_55, %c0_56], %72 {strides = array<i32>} : memref<16x128xf32, #tpu.memory_space<vmem>>, vector<16x128xf32>,
    return
  }
  func.func @transform_0(%arg0: i32) -> (i32, i32) {
    %c0_i32 = arith.constant 0 : i32
    %c0_i32_0 = arith.constant 0 : i32
    return %c0_i32, %arg0 : i32, i32
  }
  func.func @transform_1(%arg0: i32) -> (i32, i32, i32) {
    %c0_i32 = arith.constant 0 : i32
    %c0_i32_0 = arith.constant 0 : i32
    %c0_i32_1 = arith.constant 0 : i32
    return %c0_i32, %c0_i32_0, %arg0 : i32, i32, i32
  }
  func.func @transform_2(%arg0: i32) -> (i32, i32, i32) {
    %c0_i32 = arith.constant 0 : i32
    %c0_i32_0 = arith.constant 0 : i32
    %c0_i32_1 = arith.constant 0 : i32
    %c0_i32_2 = arith.constant 0 : i32
    return %c0_i32, %c0_i32_0, %c0_i32_1 : i32, i32, i32
  }
  func.func @transform_3(%arg0: i32) -> (i32, i32) {
    %c0_i32 = arith.constant 0 : i32
    %c0_i32_0 = arith.constant 0 : i32
    %c0_i32_1 = arith.constant 0 : i32
    return %c0_i32, %c0_i32_0 : i32, i32
  }
  func.func @transform_4(%arg0: i32) -> (i32, i32) {
    %c0_i32 = arith.constant 0 : i32
    %c0_i32_0 = arith.constant 0 : i32
    %c0_i32_1 = arith.constant 0 : i32
    return %c0_i32, %c0_i32_0 : i32, i32
  }
  func.func @transform_5(%arg0: i32) -> (i32, i32) {
    %c0_i32 = arith.constant 0 : i32
    %c0_i32_0 = arith.constant 0 : i32
    %c0_i32_1 = arith.constant 0 : i32
    return %c0_i32, %c0_i32_0 : i32, i32
  }
  func.func @transform_6(%arg0: i32) -> (i32, i32) {
    %c0_i32 = arith.constant 0 : i32
    %c0_i32_0 = arith.constant 0 : i32
    return %c0_i32, %arg0 : i32, i32
  }
}

</mosaic_0001>

<llo_original>
// kernel: shufflenet_v2_block.1
$region0: #{shufflenet_v2_block.1}
  #allocation0 [shape = 'u32[]', space=smem, size = 0x4, offset = 0x4, fixed_abs, tag = 'smem constant byte address 0x4 - core index']
  #allocation1 [shape = 'u32[72,128]{1,0:T(1,128)}', space=vmem, size = 0x9000, scoped, tag = 'internal scratch']
  %s0 = inlined_call_operand.vmem [shape: f32[8,512], index: 0, kind: input, shape index: {}]
  %s1 = inlined_call_operand.vmem [shape: f32[9,8,512], index: 1, kind: input, shape index: {}]
  %s2 = inlined_call_operand.vmem [shape: f32[9,8,1], index: 2, kind: input, shape index: {}]
  %s3 = inlined_call_operand.vmem [shape: f32[16,8], index: 3, kind: input, shape index: {}]
  %s4 = inlined_call_operand.vmem [shape: f32[16,8], index: 4, kind: input, shape index: {}]
  %s5 = inlined_call_operand.vmem [shape: f32[16,1], index: 5, kind: input, shape index: {}]
  %s6 = inlined_call_operand.vmem [shape: f32[16,512], index: 6, kind: output, shape index: {}]
  %s7 = sld [smem:[#allocation0]]
  $region129: #{shufflenet_v2_block.1} parent=0
    _
  %s9 = ssub.s32 1, %s7
  %s10 = scalar_select 0, %s9, %s7
  $region1: #{shufflenet_v2_block.1} parent=0
    #allocation2 [shape = 'u8[73728]{0}', space=vmem, size = 0x12000, scoped, tag = 'input window, operand 1']
    #allocation3 [shape = 'u8[16384]{0}', space=vmem, size = 0x4000, scoped, tag = 'output window, operand 0']
    loop: start=0, step=1, limit=6
    $region2: #{shufflenet_v2_block.1} parent=1 // loop_pre_header
      _
    $region3: #{shufflenet_v2_block.1} parent=1 // loop_header
      %s12 = sphi 0, %s16
      %p13 = scmp.ge.s32.totalorder %s12, 6
      %s22 = sphi 0, %s24
      %s25 = sphi 0, %s22
      %s26 = sphi 0, %s25
      %s42 = sphi 0, %s26
      %s48 = sphi 0, %s50
      %s51 = sphi 0, %s48
      %s52 = sphi 0, %s51
      %s68 = sphi 0, %s52
      %s72 = sphi 0, %s72
      %s74 = sphi 0, %s72
      %s75 = sphi 0, %s74
      %s89 = sphi 0, %s75
      %s93 = sphi 0, %s93
      %s95 = sphi 0, %s93
      %s96 = sphi 0, %s95
      %s110 = sphi 0, %s96
      %s114 = sphi 0, %s114
      %s116 = sphi 0, %s114
      %s117 = sphi 0, %s116
      %s131 = sphi 0, %s117
      %s135 = sphi 0, %s135
      %s137 = sphi 0, %s135
      %s138 = sphi 0, %s137
      %s152 = sphi 0, %s138
      %s158 = sphi 0, %s160
      %s161 = sphi 0, %s158
      %s162 = sphi 0, %s161
      %s178 = sphi 0, %s162
    $region4: #{shufflenet_v2_block.1} parent=1 // loop_header_branch
      %15 = sbr.rel (%p13) target = $region8
    $region5: #{shufflenet_v2_block.1} parent=1 // loop_body
      %s17 = ssub.s32 %s12, 1
      %s18 = ssub.s32 %s12, 2
      %s19 = sadd.s32 %s12, 1
      %s20 = ssub.s32 %s12, %s19
      %p21 = scmp.eq.s32.totalorder %s20, 0
      %s23 = sadd.s32 %s22, 1
      %s24 = scalar_select %p21, %s22, %s23
      %p27 = pneg %p21
      %p28 = scmp.eq.s32.totalorder %s12, 3
      %p29 = por %p27, %p28
      %p30 = scmp.ne.s32.totalorder %s22, %s25
      %p31 = scmp.eq.s32.totalorder %s12, 0
      %p32 = por %p30, %p31
      %p33 = scmp.ne.s32.totalorder %s22, %s25
      %p34 = scmp.eq.s32.totalorder %s17, 3
      %p35 = por %p33, %p34
      %p36 = scmp.ne.s32.totalorder %s25, %s26
      %p37 = scmp.eq.s32.totalorder %s17, 0
      %p38 = por %p36, %p37
      %p39 = scmp.ne.s32.totalorder %s25, %s26
      %p40 = scmp.eq.s32.totalorder %s18, 3
      %p41 = por %p39, %p40
      %p43 = scmp.ne.s32.totalorder %s26, %s42
      %p44 = scmp.eq.s32.totalorder %s18, 0
      %p45 = por %p43, %p44
      %s46 = ssub.s32 %s12, %s19
      %p47 = scmp.eq.s32.totalorder %s46, 0
      %s49 = sadd.s32 %s48, 1
      %s50 = scalar_select %p47, %s48, %s49
      %p53 = pneg %p47
      %p54 = scmp.eq.s32.totalorder %s12, 3
      %p55 = por %p53, %p54
      %p56 = scmp.ne.s32.totalorder %s48, %s51
      %p57 = scmp.eq.s32.totalorder %s12, 0
      %p58 = por %p56, %p57
      %p59 = scmp.ne.s32.totalorder %s48, %s51
      %p60 = scmp.eq.s32.totalorder %s17, 3
      %p61 = por %p59, %p60
      %p62 = scmp.ne.s32.totalorder %s51, %s52
      %p63 = scmp.eq.s32.totalorder %s17, 0
      %p64 = por %p62, %p63
      %p65 = scmp.ne.s32.totalorder %s51, %s52
      %p66 = scmp.eq.s32.totalorder %s18, 3
      %p67 = por %p65, %p66
      %p69 = scmp.ne.s32.totalorder %s52, %s68
      %p70 = scmp.eq.s32.totalorder %s18, 0
      %p71 = por %p69, %p70
      %s73 = sadd.s32 %s72, 1
      %p76 = scmp.eq.s32.totalorder %s12, 3
      %p77 = scmp.ne.s32.totalorder %s72, %s74
      %p78 = scmp.eq.s32.totalorder %s12, 0
      %p79 = por %p77, %p78
      %p80 = scmp.ne.s32.totalorder %s72, %s74
      %p81 = scmp.eq.s32.totalorder %s17, 3
      %p82 = por %p80, %p81
      %p83 = scmp.ne.s32.totalorder %s74, %s75
      %p84 = scmp.eq.s32.totalorder %s17, 0
      %p85 = por %p83, %p84
      %p86 = scmp.ne.s32.totalorder %s74, %s75
      %p87 = scmp.eq.s32.totalorder %s18, 3
      %p88 = por %p86, %p87
      %p90 = scmp.ne.s32.totalorder %s75, %s89
      %p91 = scmp.eq.s32.totalorder %s18, 0
      %p92 = por %p90, %p91
      %s94 = sadd.s32 %s93, 1
      %p97 = scmp.eq.s32.totalorder %s12, 3
      %p98 = scmp.ne.s32.totalorder %s93, %s95
      %p99 = scmp.eq.s32.totalorder %s12, 0
      %p100 = por %p98, %p99
      %p101 = scmp.ne.s32.totalorder %s93, %s95
      %p102 = scmp.eq.s32.totalorder %s17, 3
      %p103 = por %p101, %p102
      %p104 = scmp.ne.s32.totalorder %s95, %s96
      %p105 = scmp.eq.s32.totalorder %s17, 0
      %p106 = por %p104, %p105
      %p107 = scmp.ne.s32.totalorder %s95, %s96
      %p108 = scmp.eq.s32.totalorder %s18, 3
      %p109 = por %p107, %p108
      %p111 = scmp.ne.s32.totalorder %s96, %s110
      %p112 = scmp.eq.s32.totalorder %s18, 0
      %p113 = por %p111, %p112
      %s115 = sadd.s32 %s114, 1
      %p118 = scmp.eq.s32.totalorder %s12, 3
      %p119 = scmp.ne.s32.totalorder %s114, %s116
      %p120 = scmp.eq.s32.totalorder %s12, 0
      %p121 = por %p119, %p120
      %p122 = scmp.ne.s32.totalorder %s114, %s116
      %p123 = scmp.eq.s32.totalorder %s17, 3
      %p124 = por %p122, %p123
      %p125 = scmp.ne.s32.totalorder %s116, %s117
      %p126 = scmp.eq.s32.totalorder %s17, 0
      %p127 = por %p125, %p126
      %p128 = scmp.ne.s32.totalorder %s116, %s117
      %p129 = scmp.eq.s32.totalorder %s18, 3
      %p130 = por %p128, %p129
      %p132 = scmp.ne.s32.totalorder %s117, %s131
      %p133 = scmp.eq.s32.totalorder %s18, 0
      %p134 = por %p132, %p133
      %s136 = sadd.s32 %s135, 1
      %p139 = scmp.eq.s32.totalorder %s12, 3
      %p140 = scmp.ne.s32.totalorder %s135, %s137
      %p141 = scmp.eq.s32.totalorder %s12, 0
      %p142 = por %p140, %p141
      %p143 = scmp.ne.s32.totalorder %s135, %s137
      %p144 = scmp.eq.s32.totalorder %s17, 3
      %p145 = por %p143, %p144
      %p146 = scmp.ne.s32.totalorder %s137, %s138
      %p147 = scmp.eq.s32.totalorder %s17, 0
      %p148 = por %p146, %p147
      %p149 = scmp.ne.s32.totalorder %s137, %s138
      %p150 = scmp.eq.s32.totalorder %s18, 3
      %p151 = por %p149, %p150
      %p153 = scmp.ne.s32.totalorder %s138, %s152
      %p154 = scmp.eq.s32.totalorder %s18, 0
      %p155 = por %p153, %p154
      %s156 = ssub.s32 %s12, %s19
      %p157 = scmp.eq.s32.totalorder %s156, 0
      %s159 = sadd.s32 %s158, 1
      %s160 = scalar_select %p157, %s158, %s159
      %p163 = pneg %p157
      %p164 = scmp.eq.s32.totalorder %s12, 3
      %p165 = por %p163, %p164
      %p166 = scmp.ne.s32.totalorder %s158, %s161
      %p167 = scmp.eq.s32.totalorder %s12, 0
      %p168 = por %p166, %p167
      %p169 = scmp.ne.s32.totalorder %s158, %s161
      %p170 = scmp.eq.s32.totalorder %s17, 3
      %p171 = por %p169, %p170
      %p172 = scmp.ne.s32.totalorder %s161, %s162
      %p173 = scmp.eq.s32.totalorder %s17, 0
      %p174 = por %p172, %p173
      %p175 = scmp.ne.s32.totalorder %s161, %s162
      %p176 = scmp.eq.s32.totalorder %s18, 3
      %p177 = por %p175, %p176
      %p179 = scmp.ne.s32.totalorder %s162, %s178
      %p180 = scmp.eq.s32.totalorder %s18, 0
      %p181 = por %p179, %p180
      %p182 = scmp.le.s32.totalorder 1, %s12
      %p183 = scmp.lt.s32.totalorder %s12, 5
      %p184 = pnand %p182, %p183
      %p185 = pneg %p184
      // Predicated region
      $region9: #{shufflenet_v2_block.1} parent=5 // pred_check
        _
      $region10: #{shufflenet_v2_block.1} parent=5 // pred_check_branch
        %187 = sbr.rel (%p184) target = $region12
      $region11: #{shufflenet_v2_block.1} parent=5 // pred_region
        %s188 = ssub.s32 %s12, 1
        // Predicated region
        $region13: #{shufflenet_v2_block.1} parent=11 // pred_check
          %p189 = pneg %p85
        $region14: #{shufflenet_v2_block.1} parent=11 // pred_check_branch
          %191 = sbr.rel (%p189) target = $region16
        $region15: #{shufflenet_v2_block.1} parent=11 // pred_region
          _
        $region16: #{shufflenet_v2_block.1} parent=11 // pred_fallthru
          _
        // Predicated region
        $region17: #{shufflenet_v2_block.1} parent=11 // pred_check
          %p192 = pneg %p106
        $region18: #{shufflenet_v2_block.1} parent=11 // pred_check_branch
          %194 = sbr.rel (%p192) target = $region20
        $region19: #{shufflenet_v2_block.1} parent=11 // pred_region
          _
        $region20: #{shufflenet_v2_block.1} parent=11 // pred_fallthru
          _
        // Predicated region
        $region21: #{shufflenet_v2_block.1} parent=11 // pred_check
          %p195 = pneg %p127
        $region22: #{shufflenet_v2_block.1} parent=11 // pred_check_branch
          %197 = sbr.rel (%p195) target = $region24
        $region23: #{shufflenet_v2_block.1} parent=11 // pred_region
          _
        $region24: #{shufflenet_v2_block.1} parent=11 // pred_fallthru
          _
        // Predicated region
        $region25: #{shufflenet_v2_block.1} parent=11 // pred_check
          %p198 = pneg %p148
        $region26: #{shufflenet_v2_block.1} parent=11 // pred_check_branch
          %200 = sbr.rel (%p198) target = $region28
        $region27: #{shufflenet_v2_block.1} parent=11 // pred_region
          _
        $region28: #{shufflenet_v2_block.1} parent=11 // pred_fallthru
          _
      $region12: #{shufflenet_v2_block.1} parent=5 // pred_fallthru
        _
      %p201 = scmp.lt.s32.totalorder %s12, 4
      // Predicated region
      $region29: #{shufflenet_v2_block.1} parent=5 // pred_check
        %p202 = pneg %p201
      $region30: #{shufflenet_v2_block.1} parent=5 // pred_check_branch
        %204 = sbr.rel (%p202) target = $region32
      $region31: #{shufflenet_v2_block.1} parent=5 // pred_region
        // Predicated region
        $region33: #{shufflenet_v2_block.1} parent=31 // pred_check
          %p205 = pneg %p32
        $region34: #{shufflenet_v2_block.1} parent=31 // pred_check_branch
          %207 = sbr.rel (%p205) target = $region36
        $region35: #{shufflenet_v2_block.1} parent=31 // pred_region
          %p208 = scmp.lt.s32.totalorder %s12, 3
          %s209 = scalar_select %p208, %s12, 3
          %s210 = smul.addr %s209, 8
          %s211 = scalar_lea.vmem %s0, %s210
        $region36: #{shufflenet_v2_block.1} parent=31 // pred_fallthru
          _
        // Predicated region
        $region37: #{shufflenet_v2_block.1} parent=31 // pred_check
          %p212 = pneg %p58
        $region38: #{shufflenet_v2_block.1} parent=31 // pred_check_branch
          %214 = sbr.rel (%p212) target = $region40
        $region39: #{shufflenet_v2_block.1} parent=31 // pred_region
          %s215 = sand.u32 %s48, 1
          %s216 = sand.u32 %s48, 1
          %s217 = smul.addr %s216, 72
          %s218 = scalar_lea.vmem [#allocation2], %s217
          %s219 = smul.addr %s12, 8
          %s220 = scalar_lea.vmem %s1, %s219
          // Predicated region
          $region41: #{shufflenet_v2_block.1} parent=39 // pred_check
            _
          $region42: #{shufflenet_v2_block.1} parent=39 // pred_check_branch
            %222 = sbr.rel (0) target = $region44
          $region43: #{shufflenet_v2_block.1} parent=39 // pred_region
            // Predicated region
            $region45: #{shufflenet_v2_block.1} parent=43 // pred_check
              _
            $region46: #{shufflenet_v2_block.1} parent=43 // pred_check_branch
              %224 = sbr.rel (0) target = $region48
            $region47: #{shufflenet_v2_block.1} parent=43 // pred_region
              // Predicated region
              $region60: #{shufflenet_v2_block.1} parent=47 // pred_check
                _
              $region61: #{shufflenet_v2_block.1} parent=47 // pred_check_branch
                %256 = sbr.rel (0) target = $region63
              $region62: #{shufflenet_v2_block.1} parent=47 // pred_region
                loop: start=0, step=1, limit=1
                $region64: #{shufflenet_v2_block.1} parent=62 // loop_pre_header
                  _
                $region65: #{shufflenet_v2_block.1} parent=62 // loop_header
                  %s258 = sphi 0, %s262
                  %p259 = scmp.ge.s32.totalorder %s258, 1
                  %s263 = sphi %s220, %s220
                  %s264 = sphi %s218, %s218
                $region66: #{shufflenet_v2_block.1} parent=62 // loop_header_branch
                  %261 = sbr.rel (%p259) target = $region70
                $region67: #{shufflenet_v2_block.1} parent=62 // loop_body
                  %v265 = vld [vmem:[%s263] sm:$0xff]
                  %266 = vst [vmem:[%s264] sm:$0xff] %v265
                  %v267 = vld [vmem:[%s263 + $0x20] sm:$0xff]
                  %268 = vst [vmem:[%s264 + $0x8] sm:$0xff] %v267
                  %v269 = vld [vmem:[%s263 + $0x40] sm:$0xff]
                  %270 = vst [vmem:[%s264 + $0x10] sm:$0xff] %v269
                  %v271 = vld [vmem:[%s263 + $0x60] sm:$0xff]
                  %272 = vst [vmem:[%s264 + $0x18] sm:$0xff] %v271
                  %v273 = vld [vmem:[%s263 + $0x80] sm:$0xff]
                  %274 = vst [vmem:[%s264 + $0x20] sm:$0xff] %v273
                  %v275 = vld [vmem:[%s263 + $0xa0] sm:$0xff]
                  %276 = vst [vmem:[%s264 + $0x28] sm:$0xff] %v275
                  %v277 = vld [vmem:[%s263 + $0xc0] sm:$0xff]
                  %278 = vst [vmem:[%s264 + $0x30] sm:$0xff] %v277
                  %v279 = vld [vmem:[%s263 + $0xe0] sm:$0xff]
                  %280 = vst [vmem:[%s264 + $0x38] sm:$0xff] %v279
                  %v281 = vld [vmem:[%s263 + $0x100] sm:$0xff]
                  %282 = vst [vmem:[%s264 + $0x40] sm:$0xff] %v281
                $region68: #{shufflenet_v2_block.1} parent=62 // loop_footer
                  %s262 = sadd.s32 1, %s258
                $region69: #{shufflenet_v2_block.1} parent=62 // loop_footer_branch
                  %257 = sbr.rel target = $region65
                $region70: #{shufflenet_v2_block.1} parent=62 // loop_exit
                  _
              $region63: #{shufflenet_v2_block.1} parent=47 // pred_fallthru
                _
              // Predicated region
              $region71: #{shufflenet_v2_block.1} parent=47 // pred_check
                _
              $region72: #{shufflenet_v2_block.1} parent=47 // pred_check_branch
                %284 = sbr.rel target = $region74
              $region73: #{shufflenet_v2_block.1} parent=47 // pred_region
                _
              $region74: #{shufflenet_v2_block.1} parent=47 // pred_fallthru
                _
            $region48: #{shufflenet_v2_block.1} parent=43 // pred_fallthru
              _
            // Predicated region
            $region49: #{shufflenet_v2_block.1} parent=43 // pred_check
              _
            $region50: #{shufflenet_v2_block.1} parent=43 // pred_check_branch
              %226 = sbr.rel target = $region52
            $region51: #{shufflenet_v2_block.1} parent=43 // pred_region
              %s228 = ssub.s32 256, 1
              loop: start=0, step=1, limit=1
              $region53: #{shufflenet_v2_block.1} parent=51 // loop_pre_header
                _
              $region54: #{shufflenet_v2_block.1} parent=51 // loop_header
                %s230 = sphi 0, %s234
                %p231 = scmp.ge.s32.totalorder %s230, 1
                %s235 = sphi %s220, %s220
                %s236 = sphi %s218, %s218
              $region55: #{shufflenet_v2_block.1} parent=51 // loop_header_branch
                %233 = sbr.rel (%p231) target = $region59
              $region56: #{shufflenet_v2_block.1} parent=51 // loop_body
                %v237 = vld [vmem:[%s235] sm:%s228]
                %238 = vst [vmem:[%s236] sm:%s228] %v237
                %v239 = vld [vmem:[%s235 + $0x20] sm:%s228]
                %240 = vst [vmem:[%s236 + $0x8] sm:%s228] %v239
                %v241 = vld [vmem:[%s235 + $0x40] sm:%s228]
                %242 = vst [vmem:[%s236 + $0x10] sm:%s228] %v241
                %v243 = vld [vmem:[%s235 + $0x60] sm:%s228]
                %244 = vst [vmem:[%s236 + $0x18] sm:%s228] %v243
                %v245 = vld [vmem:[%s235 + $0x80] sm:%s228]
                %246 = vst [vmem:[%s236 + $0x20] sm:%s228] %v245
                %v247 = vld [vmem:[%s235 + $0xa0] sm:%s228]
                %248 = vst [vmem:[%s236 + $0x28] sm:%s228] %v247
                %v249 = vld [vmem:[%s235 + $0xc0] sm:%s228]
                %250 = vst [vmem:[%s236 + $0x30] sm:%s228] %v249
                %v251 = vld [vmem:[%s235 + $0xe0] sm:%s228]
                %252 = vst [vmem:[%s236 + $0x38] sm:%s228] %v251
                %v253 = vld [vmem:[%s235 + $0x100] sm:%s228]
                %254 = vst [vmem:[%s236 + $0x40] sm:%s228] %v253
              $region57: #{shufflenet_v2_block.1} parent=51 // loop_footer
                %s234 = sadd.s32 1, %s230
              $region58: #{shufflenet_v2_block.1} parent=51 // loop_footer_branch
                %229 = sbr.rel target = $region54
              $region59: #{shufflenet_v2_block.1} parent=51 // loop_exit
                _
            $region52: #{shufflenet_v2_block.1} parent=43 // pred_fallthru
              _
          $region44: #{shufflenet_v2_block.1} parent=39 // pred_fallthru
            _
          %285 = vnop
        $region40: #{shufflenet_v2_block.1} parent=31 // pred_fallthru
          _
      $region32: #{shufflenet_v2_block.1} parent=5 // pred_fallthru
        _
      %p286 = scmp.le.s32.totalorder 1, %s12
      %p287 = scmp.lt.s32.totalorder %s12, 5
      %p288 = pnand %p286, %p287
      %p289 = pneg %p288
      // Predicated region
      $region75: #{shufflenet_v2_block.1} parent=5 // pred_check
        _
      $region76: #{shufflenet_v2_block.1} parent=5 // pred_check_branch
        %291 = sbr.rel (%p288) target = $region78
      $region77: #{shufflenet_v2_block.1} parent=5 // pred_region
        %s292 = ssub.s32 %s12, 1
        %s293 = sand.u32 %s51, 1
        %s294 = sand.u32 %s51, 1
        %s295 = smul.addr %s294, 72
        %s296 = scalar_lea.vmem [#allocation2], %s295
        // Predicated region
        $region79: #{shufflenet_v2_block.1} parent=77 // pred_check
          %p297 = pneg %p64
        $region80: #{shufflenet_v2_block.1} parent=77 // pred_check_branch
          %299 = sbr.rel (%p297) target = $region82
        $region81: #{shufflenet_v2_block.1} parent=77 // pred_region
          _
        $region82: #{shufflenet_v2_block.1} parent=77 // pred_fallthru
          _
        %p300 = scmp.lt.s32.totalorder %s17, 3
        %s301 = scalar_select %p300, %s17, 3
        %s302 = smul.addr %s301, 8
        %s303 = scalar_lea.vmem %s0, %s302
        %p304 = pneg %p38
        %p305 = pneg %p35
        %s306 = sand.u32 %s51, 1
        %s307 = sand.u32 %s51, 1
        %s308 = smul.addr %s307, 72
        %s309 = scalar_lea.vmem [#allocation2], %s308
        %p310 = pneg %p64
        %p311 = pneg %p61
        %p312 = pneg %p85
        %p313 = pneg %p82
        %p314 = pneg %p106
        %p315 = pneg %p103
        %p316 = pneg %p127
        %p317 = pneg %p124
        %p318 = pneg %p148
        %p319 = pneg %p145
        %p320 = pneg %p174
        %p321 = pneg %p171
        %s322 = sand.u32 %s161, 1
        %s323 = sand.u32 %s161, 1
        %s324 = smul.addr %s323, 16
        %s325 = scalar_lea.vmem [#allocation3], %s324
        %p326 = scmp.lt.s32.totalorder %s17, 3
        %s327 = scalar_select %p326, %s17, 3
        %s328 = smul.addr %s327, 8
        %s329 = scalar_lea.vmem %s0, %s328
        %v330 = vld [vmem:[%s296] sm:$0xff]
        %v331 = vld [vmem:[%s2] sm:$0xff]
        %333 = vset.pattern.permute.xlu0 0
        %334 = vperm.xlu0 %333, %v331
        %v335 = vpop.permute.xlu0 %334
        %v337 = vmul.f32 %v330, %v335
        %s338 = scalar_lea.vmem %s296, 8 [#allocation2]
        %v339 = vld [vmem:[%s338] sm:$0xff]
        %s340 = scalar_lea.vmem %s2, 8
        %v341 = vld [vmem:[%s340] sm:$0xff]
        %343 = vset.pattern.permute.xlu0 0
        %344 = vperm.xlu0 %343, %v341
        %v345 = vpop.permute.xlu0 %344
        %v347 = vmul.f32 %v339, %v345
        %v348 = vadd.f32 %v337, %v347
        %s349 = scalar_lea.vmem %s296, 16 [#allocation2]
        %v350 = vld [vmem:[%s349] sm:$0xff]
        %s351 = scalar_lea.vmem %s2, 16
        %v352 = vld [vmem:[%s351] sm:$0xff]
        %354 = vset.pattern.permute.xlu0 0
        %355 = vperm.xlu0 %354, %v352
        %v356 = vpop.permute.xlu0 %355
        %v358 = vmul.f32 %v350, %v356
        %v359 = vadd.f32 %v348, %v358
        %s360 = scalar_lea.vmem %s296, 24 [#allocation2]
        %v361 = vld [vmem:[%s360] sm:$0xff]
        %s362 = scalar_lea.vmem %s2, 24
        %v363 = vld [vmem:[%s362] sm:$0xff]
        %365 = vset.pattern.permute.xlu0 0
        %366 = vperm.xlu0 %365, %v363
        %v367 = vpop.permute.xlu0 %366
        %v369 = vmul.f32 %v361, %v367
        %v370 = vadd.f32 %v359, %v369
        %s371 = scalar_lea.vmem %s296, 32 [#allocation2]
        %v372 = vld [vmem:[%s371] sm:$0xff]
        %s373 = scalar_lea.vmem %s2, 32
        %v374 = vld [vmem:[%s373] sm:$0xff]
        %376 = vset.pattern.permute.xlu0 0
        %377 = vperm.xlu0 %376, %v374
        %v378 = vpop.permute.xlu0 %377
        %v380 = vmul.f32 %v372, %v378
        %v381 = vadd.f32 %v370, %v380
        %s382 = scalar_lea.vmem %s296, 40 [#allocation2]
        %v383 = vld [vmem:[%s382] sm:$0xff]
        %s384 = scalar_lea.vmem %s2, 40
        %v385 = vld [vmem:[%s384] sm:$0xff]
        %387 = vset.pattern.permute.xlu0 0
        %388 = vperm.xlu0 %387, %v385
        %v389 = vpop.permute.xlu0 %388
        %v391 = vmul.f32 %v383, %v389
        %v392 = vadd.f32 %v381, %v391
        %s393 = scalar_lea.vmem %s296, 48 [#allocation2]
        %v394 = vld [vmem:[%s393] sm:$0xff]
        %s395 = scalar_lea.vmem %s2, 48
        %v396 = vld [vmem:[%s395] sm:$0xff]
        %398 = vset.pattern.permute.xlu0 0
        %399 = vperm.xlu0 %398, %v396
        %v400 = vpop.permute.xlu0 %399
        %v402 = vmul.f32 %v394, %v400
        %v403 = vadd.f32 %v392, %v402
        %s404 = scalar_lea.vmem %s296, 56 [#allocation2]
        %v405 = vld [vmem:[%s404] sm:$0xff]
        %s406 = scalar_lea.vmem %s2, 56
        %v407 = vld [vmem:[%s406] sm:$0xff]
        %409 = vset.pattern.permute.xlu0 0
        %410 = vperm.xlu0 %409, %v407
        %v411 = vpop.permute.xlu0 %410
        %v413 = vmul.f32 %v405, %v411
        %v414 = vadd.f32 %v403, %v413
        %s415 = scalar_lea.vmem %s296, 64 [#allocation2]
        %v416 = vld [vmem:[%s415] sm:$0xff]
        %s417 = scalar_lea.vmem %s2, 64
        %v418 = vld [vmem:[%s417] sm:$0xff]
        %420 = vset.pattern.permute.xlu0 0
        %421 = vperm.xlu0 %420, %v418
        %v422 = vpop.permute.xlu0 %421
        %v424 = vmul.f32 %v416, %v422
        %v425 = vadd.f32 %v414, %v424
        %v426 = vld [vmem:[%s3] sm:$0xff]
        %v427 = vld [vmem:[%s3 + $0x8] sm:$0xff]
        %v428 = vld [vmem:[%s5] sm:$0xff]
        %v429 = vld [vmem:[%s5 + $0x8] sm:$0xff]
        %431 = vset.pattern.permute.xlu0 0
        %432 = vperm.xlu0 %431, %v428
        %v433 = vpop.permute.xlu0 %432
        %436 = vset.pattern.permute.xlu0 0
        %437 = vperm.xlu0 %436, %v429
        %v438 = vpop.permute.xlu0 %437
        %vm440 = vcmask 64512
        %v442 = vsel %vm440, %v426, 0
        %v445 = vsel %vm440, %v427, 0
        %447 = vmatpush.msra.mxu0 0.0
        %448 = vmatpush.msra.mxu0 0.0
        %449 = vmatpush.msra.mxu0 0.0
        %450 = vmatpush.msra.mxu0 0.0
        %451 = vmatpush.msra.mxu0 0.0
        %452 = vmatpush.msra.mxu0 0.0
        %453 = vmatpush.msra.mxu0 0.0
        %454 = vmatpush.msra.mxu0 0.0
        %455 = vmatpush.msra.mxu0 0.0
        %456 = vmatpush.msra.mxu0 0.0
        %457 = vmatpush.msra.mxu0 0.0
        %458 = vmatpush.msra.mxu0 0.0
        %459 = vmatpush.msra.mxu0 0.0
        %460 = vmatpush.msra.mxu0 0.0
        %461 = vmatpush.msra.mxu0 0.0
        %462 = vmatpush.msra.mxu0 %v425
        %463 = vmatmul.f32.gmra.mxu0 %v442
        %v464 = vpop.f32.mrf.mxu0
        %v465 = vadd.f32 %v433, %v464
        %466 = vmatmul.f32.gmra.mxu0 %v445
        %v467 = vpop.f32.mrf.mxu0
        %v468 = vadd.f32 %v438, %v467
        %469 = vdwg.mxu0
        %v470 = vmax.f32 %v465, 0.0
        %v471 = vmax.f32 %v468, 0.0
        %v472 = vld [vmem:[%s4] sm:$0xff]
        %v473 = vld [vmem:[%s4 + $0x8] sm:$0xff]
        %v474 = vld [vmem:[%s329] sm:$0xff]
        %v476 = vsel %vm440, %v472, 0
        %v479 = vsel %vm440, %v473, 0
        %481 = vmatpush.msra.mxu0 0.0
        %482 = vmatpush.msra.mxu0 0.0
        %483 = vmatpush.msra.mxu0 0.0
        %484 = vmatpush.msra.mxu0 0.0
        %485 = vmatpush.msra.mxu0 0.0
        %486 = vmatpush.msra.mxu0 0.0
        %487 = vmatpush.msra.mxu0 0.0
        %488 = vmatpush.msra.mxu0 0.0
        %489 = vmatpush.msra.mxu0 0.0
        %490 = vmatpush.msra.mxu0 0.0
        %491 = vmatpush.msra.mxu0 0.0
        %492 = vmatpush.msra.mxu0 0.0
        %493 = vmatpush.msra.mxu0 0.0
        %494 = vmatpush.msra.mxu0 0.0
        %495 = vmatpush.msra.mxu0 0.0
        %496 = vmatpush.msra.mxu0 %v474
        %497 = vmatmul.f32.gmra.mxu0 %v476
        %v498 = vpop.f32.mrf.mxu0
        %v499 = vadd.f32 0.0, %v498
        %500 = vmatmul.f32.gmra.mxu0 %v479
        %v501 = vpop.f32.mrf.mxu0
        %v502 = vadd.f32 0.0, %v501
        %503 = vdwg.mxu0
        %v504 = vadd.f32 %v470, %v499
        %v505 = vadd.f32 %v471, %v502
        %506 = vst [vmem:[%s325] sm:$0xff] %v504
        %507 = vst [vmem:[%s325 + $0x8] sm:$0xff] %v505
        %s508 = sand.u32 %s161, 1
        %s509 = sand.u32 %s161, 1
        %s510 = smul.addr %s509, 16
        %s511 = scalar_lea.vmem [#allocation3], %s510
        // Predicated region
        $region83: #{shufflenet_v2_block.1} parent=77 // pred_check
          %p512 = pneg %p171
        $region84: #{shufflenet_v2_block.1} parent=77 // pred_check_branch
          %514 = sbr.rel (%p512) target = $region86
        $region85: #{shufflenet_v2_block.1} parent=77 // pred_region
          %s515 = smul.addr %s17, 8
          %s516 = scalar_lea.vmem %s6, %s515
          // Predicated region
          $region87: #{shufflenet_v2_block.1} parent=85 // pred_check
            _
          $region88: #{shufflenet_v2_block.1} parent=85 // pred_check_branch
            %518 = sbr.rel (0) target = $region90
          $region89: #{shufflenet_v2_block.1} parent=85 // pred_region
            // Predicated region
            $region91: #{shufflenet_v2_block.1} parent=89 // pred_check
              _
            $region92: #{shufflenet_v2_block.1} parent=89 // pred_check_branch
              %520 = sbr.rel (0) target = $region94
            $region93: #{shufflenet_v2_block.1} parent=89 // pred_region
              // Predicated region
              $region106: #{shufflenet_v2_block.1} parent=93 // pred_check
                _
              $region107: #{shufflenet_v2_block.1} parent=93 // pred_check_branch
                %538 = sbr.rel (0) target = $region109
              $region108: #{shufflenet_v2_block.1} parent=93 // pred_region
                loop: start=0, step=1, limit=1
                $region110: #{shufflenet_v2_block.1} parent=108 // loop_pre_header
                  _
                $region111: #{shufflenet_v2_block.1} parent=108 // loop_header
                  %s540 = sphi 0, %s544
                  %p541 = scmp.ge.s32.totalorder %s540, 1
                  %s545 = sphi %s511, %s511
                  %s546 = sphi %s516, %s516
                $region112: #{shufflenet_v2_block.1} parent=108 // loop_header_branch
                  %543 = sbr.rel (%p541) target = $region116
                $region113: #{shufflenet_v2_block.1} parent=108 // loop_body
                  %v547 = vld [vmem:[%s545] sm:$0xff]
                  %548 = vst [vmem:[%s546] sm:$0xff] %v547
                  %v549 = vld [vmem:[%s545 + $0x8] sm:$0xff]
                  %550 = vst [vmem:[%s546 + $0x20] sm:$0xff] %v549
                $region114: #{shufflenet_v2_block.1} parent=108 // loop_footer
                  %s544 = sadd.s32 1, %s540
                $region115: #{shufflenet_v2_block.1} parent=108 // loop_footer_branch
                  %539 = sbr.rel target = $region111
                $region116: #{shufflenet_v2_block.1} parent=108 // loop_exit
                  _
              $region109: #{shufflenet_v2_block.1} parent=93 // pred_fallthru
                _
              // Predicated region
              $region117: #{shufflenet_v2_block.1} parent=93 // pred_check
                _
              $region118: #{shufflenet_v2_block.1} parent=93 // pred_check_branch
                %552 = sbr.rel target = $region120
              $region119: #{shufflenet_v2_block.1} parent=93 // pred_region
                _
              $region120: #{shufflenet_v2_block.1} parent=93 // pred_fallthru
                _
            $region94: #{shufflenet_v2_block.1} parent=89 // pred_fallthru
              _
            // Predicated region
            $region95: #{shufflenet_v2_block.1} parent=89 // pred_check
              _
            $region96: #{shufflenet_v2_block.1} parent=89 // pred_check_branch
              %522 = sbr.rel target = $region98
            $region97: #{shufflenet_v2_block.1} parent=89 // pred_region
              %s524 = ssub.s32 256, 1
              loop: start=0, step=1, limit=1
              $region99: #{shufflenet_v2_block.1} parent=97 // loop_pre_header
                _
              $region100: #{shufflenet_v2_block.1} parent=97 // loop_header
                %s526 = sphi 0, %s530
                %p527 = scmp.ge.s32.totalorder %s526, 1
                %s531 = sphi %s511, %s511
                %s532 = sphi %s516, %s516
              $region101: #{shufflenet_v2_block.1} parent=97 // loop_header_branch
                %529 = sbr.rel (%p527) target = $region105
              $region102: #{shufflenet_v2_block.1} parent=97 // loop_body
                %v533 = vld [vmem:[%s531] sm:%s524]
                %534 = vst [vmem:[%s532] sm:%s524] %v533
                %v535 = vld [vmem:[%s531 + $0x8] sm:%s524]
                %536 = vst [vmem:[%s532 + $0x20] sm:%s524] %v535
              $region103: #{shufflenet_v2_block.1} parent=97 // loop_footer
                %s530 = sadd.s32 1, %s526
              $region104: #{shufflenet_v2_block.1} parent=97 // loop_footer_branch
                %525 = sbr.rel target = $region100
              $region105: #{shufflenet_v2_block.1} parent=97 // loop_exit
                _
            $region98: #{shufflenet_v2_block.1} parent=89 // pred_fallthru
              _
          $region90: #{shufflenet_v2_block.1} parent=85 // pred_fallthru
            _
          %553 = vnop
        $region86: #{shufflenet_v2_block.1} parent=77 // pred_fallthru
          _
      $region78: #{shufflenet_v2_block.1} parent=5 // pred_fallthru
        _
      %p554 = scmp.le.s32.totalorder 2, %s12
      // Predicated region
      $region121: #{shufflenet_v2_block.1} parent=5 // pred_check
        %p555 = pneg %p554
      $region122: #{shufflenet_v2_block.1} parent=5 // pred_check_branch
        %557 = sbr.rel (%p555) target = $region124
      $region123: #{shufflenet_v2_block.1} parent=5 // pred_region
        %s558 = ssub.s32 %s12, 2
        // Predicated region
        $region125: #{shufflenet_v2_block.1} parent=123 // pred_check
          %p559 = pneg %p177
        $region126: #{shufflenet_v2_block.1} parent=123 // pred_check_branch
          %561 = sbr.rel (%p559) target = $region128
        $region127: #{shufflenet_v2_block.1} parent=123 // pred_region
          %s562 = sand.u32 %s162, 1
          %s563 = sand.u32 %s162, 1
          %s564 = smul.addr %s563, 16
          %s565 = scalar_lea.vmem [#allocation3], %s564
        $region128: #{shufflenet_v2_block.1} parent=123 // pred_fallthru
          _
      $region124: #{shufflenet_v2_block.1} parent=5 // pred_fallthru
        _
    $region6: #{shufflenet_v2_block.1} parent=1 // loop_footer
      %s16 = sadd.s32 1, %s12
    $region7: #{shufflenet_v2_block.1} parent=1 // loop_footer_branch
      %11 = sbr.rel target = $region3
    $region8: #{shufflenet_v2_block.1} parent=1 // loop_exit
      _

</llo_original>
